<compile_context>
chip_gen: v7x
topology: tpu7x:2x2x1
jax: 0.10.0
libtpu: 0.0.40
codegen_flags: <defaults>
</compile_context>

<pallas_src>
import functools

import jax
import jax.numpy as jnp
from jax.experimental import pallas as pl
from jax.experimental.pallas import tpu as pltpu


def _mha_kernel(kv_ref, q_ref, mask_ref, w_ref, wf_ref, v2_ref, vh_ref, selt_ref,
                out_ref, *attn_refs, n_boxes, b_block, num_heads, hidden, eps):
    """One grid step: `b_block` batches of the fused MHA forward (no unroll)."""
    H = hidden
    H2 = 2 * H
    N = n_boxes

    # ---- operands -----------------------------------------------------------
    q2 = q_ref[...].reshape(b_block, H)            # [b, H] f32 (residual)
    selt = selt_ref[...]                           # [heads, 2H] one-hot per head

    w_kv = w_ref[0:H2, :]                          # [2H, 2H] bf16 (block-diag)
    w_q = w_ref[H2:H2 + H, :]                      # [H, 2H]  bf16 (scale folded)
    b_kv = v2_ref[0:1, :]                          # [1, 2H] f32
    b_q = v2_ref[1:2, :]                           # [1, 2H] f32 (right half 0)
    b_f = vh_ref[0:1, :]                           # [1, H]
    gamma = vh_ref[1:2, :]                         # [1, H]
    beta = vh_ref[2:3, :]                          # [1, H]

    # ---- fused K/V projection: one [b*N, 2H] @ [2H, 2H] matmul --------------
    kv_flat = kv_ref[...].reshape(b_block * N, H2)                 # bf16
    kvp = jnp.dot(kv_flat, w_kv, preferred_element_type=jnp.float32) + b_kv
    kvp_bf = kvp.reshape(b_block, N, H2).astype(jnp.bfloat16)      # [b, N, 2H]

    # ---- Q projection (scale folded, right half exactly zero) ---------------
    qp2 = jnp.dot(q2.astype(jnp.bfloat16), w_q,
                  preferred_element_type=jnp.float32) + b_q        # [b, 2H]

    # Per-head query rows via one-hot selector (no head loop, no gather).
    qsel = (selt[None, :, :] * qp2[:, None, :]).astype(jnp.bfloat16)  # [b, h, 2H]

    # ---- scores[b,h,n] = sum_c qsel[b,h,c] * kvp[b,n,c]  (batched MXU) ------
    scores = jax.lax.dot_general(
        qsel, kvp_bf,
        dimension_numbers=(((2,), (2,)), ((0,), (0,))),
        preferred_element_type=jnp.float32)                        # [b, h, N]

    # Additive mask (0 / -1e30), precomputed in the wrapper, loaded once.
    scores = scores + mask_ref[...]

    # ---- softmax over the key axis ------------------------------------------
    m = jnp.max(scores, axis=-1, keepdims=True)
    e = jnp.exp(scores - m)
    attn = e / jnp.sum(e, axis=-1, keepdims=True)                  # [b, h, N] f32

    if attn_refs:
        # Lane-dense single store: heads placed side-by-side along lanes
        # -> [b, 1, heads*N] (vs heads masked 8-lane stores).
        attn_refs[0][...] = jnp.concatenate(
            [attn[:, h:h + 1, :] for h in range(num_heads)], axis=-1)

    # ---- t[b,h,c] = sum_n attn[b,h,n] * kvp[b,n,c]  (batched MXU) -----------
    t = jax.lax.dot_general(
        attn.astype(jnp.bfloat16), kvp_bf,
        dimension_numbers=(((2,), (1,)), ((0,), (0,))),
        preferred_element_type=jnp.float32)                        # [b, h, 2H]

    # context[b, c] = t[b, head(c), c] via selector multiply + head-axis sum.
    ctx = jnp.sum(selt[None, :, :] * t, axis=1)                    # [b, 2H] f32
    # (first H lanes hold attention-weighted keys; zero rows of w_f kill them)

    out = jnp.dot(ctx.astype(jnp.bfloat16), wf_ref[...],
                  preferred_element_type=jnp.float32) + b_f        # [b, H]

    # ---- residual + LayerNorm ------------------------------------------------
    y = q2 + out
    mu = jnp.mean(y, axis=-1, keepdims=True)
    var = jnp.mean((y - mu) ** 2, axis=-1, keepdims=True)
    y = (y - mu) * jax.lax.rsqrt(var + eps) * gamma + beta
    out_ref[...] = y.reshape(b_block, 1, H)


def prepare_mha_params(params, num_heads):
    """One-time parameter prep: fuse/pad/transpose weights, fold the scale."""
    H = params["wk"].shape[0]
    d = H // num_heads
    # Module semantics: scale = (dim_per_head // num_heads) ** (-0.5)
    if d // num_heads <= 0:
        raise ValueError(
            "MultiHeadAttention scale formula (dim_per_head // num_heads)**-0.5 "
            "requires image_hidden >= num_heads**2")
    scale = float((d // num_heads) ** (-0.5))

    zH = jnp.zeros((H, H), jnp.float32)
    # Block-diagonal fused K/V weight: [key|value] @ w_kv = [k_proj | v_proj].
    w_kv = jnp.concatenate(
        [jnp.concatenate([params["wk"].T, zH], axis=1),
         jnp.concatenate([zH, params["wv"].T], axis=1)], axis=0)     # [2H, 2H]
    # Q weight padded to 2H columns (right half zero), scale folded in.
    w_q = jnp.concatenate([params["wq"].T * scale, zH], axis=1)      # [H, 2H]
    w_kvq = jnp.concatenate([w_kv, w_q], axis=0).astype(jnp.bfloat16)  # [3H, 2H]
    # Final weight padded to 2H rows (top half zero).
    w_f = jnp.concatenate([zH, params["wf"].T], axis=0).astype(jnp.bfloat16)  # [2H, H]

    zv = jnp.zeros((H,), jnp.float32)
    vec2h = jnp.stack(
        [jnp.concatenate([params["bk"], params["bv"]]),
         jnp.concatenate([params["bq"] * scale, zv])], axis=0
    ).astype(jnp.float32)                                            # [2, 2H]
    vech = jnp.stack([params["bf"], params["gamma"], params["beta"]],
                     axis=0).astype(jnp.float32)                     # [3, H]

    head_of = (jnp.arange(2 * H) % H) // d
    selt = (head_of[None, :] == jnp.arange(num_heads)[:, None]
            ).astype(jnp.float32)                                    # [heads, 2H]
    return {"w_kvq": w_kvq, "w_f": w_f, "vec2h": vec2h, "vech": vech,
            "selt": selt}


def _default_b_block(batch, n_boxes, hidden):
    """Largest divisor of `batch` that fits a VMEM budget and keeps >=2 steps."""
    # Rough per-batch VMEM bytes: double-buffered bf16 kv tile + f32/bf16
    # kvp intermediates + small per-batch rows.
    per_batch = n_boxes * 2 * hidden * (2 * 2 + 4 + 2) + 16 * hidden
    budget = 8 << 20                       # well under v7x's 64 MiB VMEM
    cap = max(1, budget // max(per_batch, 1))
    if batch >= 2:
        cap = min(cap, batch // 2)         # >=2 grid steps: megacore + pipelining
    best = 1
    for cand in range(1, min(cap, batch) + 1):
        if batch % cand == 0:
            best = cand
    return best


def multi_head_attention(key_t, value_t, query_t, prepared, num_heads,
                         attn_mask=None, b_block=None, return_attention=True):
    """Returns (output [B, 1, H], attention [B*num_heads, 1, N] or None)."""
    B, N, H = key_t.shape
    heads = num_heads

    if b_block is None:
        b_block = _default_b_block(B, N, H)
    assert B % b_block == 0
    nb = B // b_block

    # Feature-concatenated K/V input for the fused block-diagonal projection.
    kv3 = jnp.concatenate([key_t, value_t], axis=-1).astype(jnp.bfloat16)  # [B,N,2H]
    q3 = query_t.astype(jnp.float32)                                       # [B,1,H]

    if attn_mask is None:
        mask_add = jnp.zeros((B, heads, N), jnp.float32)
    else:
        # Reproduce torch: attn_mask.repeat(num_heads, 1, 1) indexed at
        # batch-head index bh = b*heads + h  ->  mask[(b*heads + h) % B].
        m0 = attn_mask.reshape(B, N)
        src = jnp.arange(B * heads) % B
        mask_add = jnp.where(m0[src].reshape(B, heads, N) != 0,
                             jnp.float32(-1e30), jnp.float32(0.0))

    kernel = functools.partial(_mha_kernel, n_boxes=N, b_block=b_block,
                               num_heads=heads, hidden=H, eps=1e-5)

    out_shape = [jax.ShapeDtypeStruct((B, 1, H), jnp.float32)]
    out_specs = [pl.BlockSpec((b_block, 1, H), lambda i: (i, 0, 0))]
    if return_attention:
        out_shape.append(jax.ShapeDtypeStruct((B, 1, heads * N), jnp.float32))
        out_specs.append(pl.BlockSpec((b_block, 1, heads * N),
                                      lambda i: (i, 0, 0)))

    res = pl.pallas_call(
        kernel,
        out_shape=tuple(out_shape),
        grid_spec=pltpu.PrefetchScalarGridSpec(
            num_scalar_prefetch=0,
            grid=(nb,),
            in_specs=[
                pl.BlockSpec((b_block, N, 2 * H), lambda i: (i, 0, 0)),    # kv
                pl.BlockSpec((b_block, 1, H), lambda i: (i, 0, 0)),        # query
                pl.BlockSpec((b_block, heads, N), lambda i: (i, 0, 0)),    # mask
                pl.BlockSpec((3 * H, 2 * H), lambda i: (0, 0)),            # w_kvq
                pl.BlockSpec((2 * H, H), lambda i: (0, 0)),                # w_f
                pl.BlockSpec((2, 2 * H), lambda i: (0, 0)),                # vec2h
                pl.BlockSpec((3, H), lambda i: (0, 0)),                    # vech
                pl.BlockSpec((heads, 2 * H), lambda i: (0, 0)),            # selector
            ],
            out_specs=out_specs,
        ),
        compiler_params=pltpu.CompilerParams(
            dimension_semantics=("parallel",),
            vmem_limit_bytes=32 * 1024 * 1024),
    )(kv3, q3, mask_add, prepared["w_kvq"], prepared["w_f"],
      prepared["vec2h"], prepared["vech"], prepared["selt"])

    out = res[0]                                       # [B, 1, H]
    if return_attention:
        attention = res[1].reshape(B * heads, 1, N)    # contiguous reshape only
        return out, attention
    return out, None


def _reference(key_t, value_t, query_t, params, num_heads, attn_mask=None):
    """Pure-JAX (f32, highest precision) mirror of the PyTorch forward (eval)."""
    B, N, H = key_t.shape
    d = H // num_heads
    scale = float((d // num_heads) ** (-0.5))
    hp = jax.lax.Precision.HIGHEST
    residual = query_t
    lin = lambda x, w, b: jnp.einsum("bni,oi->bno", x, w, precision=hp) + b
    k = lin(key_t, params["wk"], params["bk"])
    v = lin(value_t, params["wv"], params["bv"])
    q = lin(query_t, params["wq"], params["bq"])
    k = k.reshape(B, N, num_heads, d).transpose(0, 2, 1, 3).reshape(B * num_heads, N, d)
    v = v.reshape(B, N, num_heads, d).transpose(0, 2, 1, 3).reshape(B * num_heads, N, d)
    q = q.reshape(B, 1, num_heads, d).transpose(0, 2, 1, 3).reshape(B * num_heads, 1, d)
    attn = jnp.einsum("bqd,bkd->bqk", q, k, precision=hp) * scale
    if attn_mask is not None:
        m = jnp.tile(attn_mask, (num_heads, 1, 1)) != 0   # torch .repeat semantics
        attn = jnp.where(m, -jnp.inf, attn)
    attn = jax.nn.softmax(attn, axis=2)
    ctx = jnp.einsum("bqk,bkd->bqd", attn, v, precision=hp)
    ctx = ctx.reshape(B, num_heads, 1, d).transpose(0, 2, 1, 3).reshape(B, 1, H)
    out = jnp.einsum("bqi,oi->bqo", ctx, params["wf"], precision=hp) + params["bf"]
    y = residual + out
    mu = jnp.mean(y, axis=-1, keepdims=True)
    var = jnp.mean((y - mu) ** 2, axis=-1, keepdims=True)
    y = (y - mu) / jnp.sqrt(var + 1e-5) * params["gamma"] + params["beta"]
    return y, attn


if __name__ == "__main__":
    B, N, H, num_heads = 2, 8, 32, 4   # image_hidden=32, box_num=8

    root = jax.random.PRNGKey(0)
    ks = jax.random.split(root, 12)
    init = lambda k, shape: jax.random.normal(k, shape, jnp.float32) * 0.1
    params = {
        "wk": init(ks[0], (H, H)), "bk": init(ks[1], (H,)),
        "wv": init(ks[2], (H, H)), "bv": init(ks[3], (H,)),
        "wq": init(ks[4], (H, H)), "bq": init(ks[5], (H,)),
        "wf": init(ks[6], (H, H)), "bf": init(ks[7], (H,)),
        "gamma": jnp.ones((H,), jnp.float32),
        "beta": jnp.zeros((H,), jnp.float32),
    }

    key_t = jax.random.normal(ks[8], (B, N, H), jnp.float32)
    value_t = jax.random.normal(ks[9], (B, N, H), jnp.float32)
    query_t = jax.random.normal(ks[10], (B, 1, H), jnp.float32)
    # mask out the last two boxes of batch 1 (never a fully-masked row)
    attn_mask = jnp.zeros((B, 1, N), jnp.float32).at[1, 0, -2:].set(1.0)

    prepared = prepare_mha_params(params, num_heads)   # one-time weight prep

    out, attention = multi_head_attention(key_t, value_t, query_t, prepared,
                                          num_heads, attn_mask)
    jax.block_until_ready((out, attention))

    # attention-output-free path (halves output DMA for callers that skip it)
    out_only, _ = multi_head_attention(key_t, value_t, query_t, prepared,
                                       num_heads, attn_mask,
                                       return_attention=False)
    jax.block_until_ready(out_only)

    ref_out, ref_attn = _reference(key_t, value_t, query_t, params,
                                   num_heads, attn_mask)

    assert out.shape == (B, 1, H)
    assert attention.shape == (B * num_heads, 1, N)
    assert bool(jnp.all(jnp.isfinite(out))) and bool(jnp.all(jnp.isfinite(attention)))
    # bf16 activations / f32 accumulation => compare with bf16-level tolerances.
    assert jnp.allclose(out, ref_out, atol=3e-2, rtol=3e-2), \
        float(jnp.max(jnp.abs(out - ref_out)))
    assert jnp.allclose(attention, ref_attn, atol=1e-2, rtol=1e-2), \
        float(jnp.max(jnp.abs(attention - ref_attn)))
    assert jnp.allclose(out_only, out, atol=1e-5, rtol=1e-5)
    print("KERNEL_OK")
</pallas_src>

<mosaic_0001>
module attributes {stable_mosaic.version = 11 : i64} {
  func.func @_mha_kernel(%arg0: i32, %arg1: memref<1x8x64xbf16, #tpu.memory_space<vmem>>, %arg2: memref<1x1x32xf32, #tpu.memory_space<vmem>>, %arg3: memref<1x4x8xf32, #tpu.memory_space<vmem>>, %arg4: memref<96x64xbf16, #tpu.memory_space<vmem>>, %arg5: memref<64x32xbf16, #tpu.memory_space<vmem>>, %arg6: memref<2x64xf32, #tpu.memory_space<vmem>>, %arg7: memref<3x32xf32, #tpu.memory_space<vmem>>, %arg8: memref<4x64xf32, #tpu.memory_space<vmem>>, %arg9: memref<1x1x32xf32, #tpu.memory_space<vmem>>, %arg10: memref<1x1x32xf32, #tpu.memory_space<vmem>>) attributes {dimension_semantics = [#tpu.dimension_semantics<parallel>], iteration_bounds = array<i64: 2>, scalar_prefetch = 0 : i64, scratch_operands = 0 : i64, tpu.core_type = #tpu.core_type<tc>, window_params = [{transform_indices = @transform_0, window_bounds = array<i64: 1, 8, 64>}, {transform_indices = @transform_1, window_bounds = array<i64: 1, 1, 32>}, {transform_indices = @transform_2, window_bounds = array<i64: 1, 4, 8>}, {pipeline_mode = #tpu.pipeline_mode<synchronous>, transform_indices = @transform_3, window_bounds = array<i64: 96, 64>}, {pipeline_mode = #tpu.pipeline_mode<synchronous>, transform_indices = @transform_4, window_bounds = array<i64: 64, 32>}, {pipeline_mode = #tpu.pipeline_mode<synchronous>, transform_indices = @transform_5, window_bounds = array<i64: 2, 64>}, {pipeline_mode = #tpu.pipeline_mode<synchronous>, transform_indices = @transform_6, window_bounds = array<i64: 3, 32>}, {pipeline_mode = #tpu.pipeline_mode<synchronous>, transform_indices = @transform_7, window_bounds = array<i64: 4, 64>}, {transform_indices = @transform_8, window_bounds = array<i64: 1, 1, 32>}, {transform_indices = @transform_9, window_bounds = array<i64: 1, 1, 32>}]} {
    %c0 = arith.constant 0 : index
    %c0_0 = arith.constant 0 : index
    %c0_1 = arith.constant 0 : index
    %0 = vector.load %arg2[%c0, %c0_0, %c0_1] : memref<1x1x32xf32, #tpu.memory_space<vmem>>, vector<1x1x32xf32>
    %1 = vector.shape_cast %0 : vector<1x1x32xf32> to vector<1x32xf32>
    %c0_2 = arith.constant 0 : index
    %c0_3 = arith.constant 0 : index
    %2 = vector.load %arg8[%c0_2, %c0_3] : memref<4x64xf32, #tpu.memory_space<vmem>>, vector<4x64xf32>
    %c0_4 = arith.constant 0 : index
    %c0_5 = arith.constant 0 : index
    %3 = vector.load %arg4[%c0_4, %c0_5] : memref<96x64xbf16, #tpu.memory_space<vmem>>, vector<64x64xbf16>
    %c64 = arith.constant 64 : index
    %c0_6 = arith.constant 0 : index
    %4 = vector.load %arg4[%c64, %c0_6] : memref<96x64xbf16, #tpu.memory_space<vmem>>, vector<32x64xbf16>
    %c0_7 = arith.constant 0 : index
    %c0_8 = arith.constant 0 : index
    %5 = vector.load %arg6[%c0_7, %c0_8] : memref<2x64xf32, #tpu.memory_space<vmem>>, vector<1x64xf32>
    %c1 = arith.constant 1 : index
    %c0_9 = arith.constant 0 : index
    %6 = vector.load %arg6[%c1, %c0_9] : memref<2x64xf32, #tpu.memory_space<vmem>>, vector<1x64xf32>
    %c0_10 = arith.constant 0 : index
    %c0_11 = arith.constant 0 : index
    %7 = vector.load %arg7[%c0_10, %c0_11] : memref<3x32xf32, #tpu.memory_space<vmem>>, vector<1x32xf32>
    %c1_12 = arith.constant 1 : index
    %c0_13 = arith.constant 0 : index
    %8 = vector.load %arg7[%c1_12, %c0_13] : memref<3x32xf32, #tpu.memory_space<vmem>>, vector<1x32xf32>
    %c2 = arith.constant 2 : index
    %c0_14 = arith.constant 0 : index
    %9 = vector.load %arg7[%c2, %c0_14] : memref<3x32xf32, #tpu.memory_space<vmem>>, vector<1x32xf32>
    %c0_15 = arith.constant 0 : index
    %c0_16 = arith.constant 0 : index
    %c0_17 = arith.constant 0 : index
    %10 = vector.load %arg1[%c0_15, %c0_16, %c0_17] : memref<1x8x64xbf16, #tpu.memory_space<vmem>>, vector<1x8x64xbf16>
    %11 = vector.shape_cast %10 : vector<1x8x64xbf16> to vector<8x64xbf16>
    %cst = arith.constant dense<0.000000e+00> : vector<8x64xf32>
    %12 = tpu.matmul %11, %3, %cst {dimension_numbers = #tpu.dot_dimension_numbers<[1], [0], [0], [1], [0, 0, 1, 1], [], []>} : vector<8x64xbf16>, vector<64x64xbf16>, vector<8x64xf32> -> vector<8x64xf32>
    %13 = vector.broadcast %5 : vector<1x64xf32> to vector<8x64xf32>
    %14 = arith.addf %12, %13 : vector<8x64xf32>
    %15 = vector.shape_cast %14 : vector<8x64xf32> to vector<1x8x64xf32>
    %16 = arith.truncf %15 : vector<1x8x64xf32> to vector<1x8x64xbf16>
    %17 = arith.truncf %1 : vector<1x32xf32> to vector<1x32xbf16>
    %cst_18 = arith.constant dense<0.000000e+00> : vector<1x64xf32>
    %18 = tpu.matmul %17, %4, %cst_18 {dimension_numbers = #tpu.dot_dimension_numbers<[1], [0], [0], [1], [0, 0, 1, 1], [], []>} : vector<1x32xbf16>, vector<32x64xbf16>, vector<1x64xf32> -> vector<1x64xf32>
    %19 = arith.addf %18, %6 : vector<1x64xf32>
    %20 = vector.shape_cast %2 : vector<4x64xf32> to vector<1x4x64xf32>
    %21 = vector.shape_cast %19 : vector<1x64xf32> to vector<1x1x64xf32>
    %22 = vector.broadcast %21 : vector<1x1x64xf32> to vector<1x4x64xf32>
    %23 = arith.mulf %20, %22 : vector<1x4x64xf32>
    %24 = arith.truncf %23 : vector<1x4x64xf32> to vector<1x4x64xbf16>
    %cst_19 = arith.constant dense<0.000000e+00> : vector<1x4x8xf32>
    %25 = tpu.matmul %24, %16, %cst_19 {dimension_numbers = #tpu.dot_dimension_numbers<[2], [2], [1], [1], [0, 0, 0, 1, 1, 1], [0], [0]>} : vector<1x4x64xbf16>, vector<1x8x64xbf16>, vector<1x4x8xf32> -> vector<1x4x8xf32>
    %c0_20 = arith.constant 0 : index
    %c0_21 = arith.constant 0 : index
    %c0_22 = arith.constant 0 : index
    %26 = vector.load %arg3[%c0_20, %c0_21, %c0_22] : memref<1x4x8xf32, #tpu.memory_space<vmem>>, vector<1x4x8xf32>
    %27 = arith.addf %25, %26 : vector<1x4x8xf32>
    %cst_23 = arith.constant dense<0xFF800000> : vector<1x4xf32>
    %28 = vector.multi_reduction <maximumf>, %27, %cst_23 [2] : vector<1x4x8xf32> to vector<1x4xf32>
    %29 = vector.shape_cast %28 : vector<1x4xf32> to vector<1x4x1xf32>
    %30 = vector.broadcast %29 : vector<1x4x1xf32> to vector<1x4x8xf32>
    %31 = arith.subf %27, %30 : vector<1x4x8xf32>
    %32 = math.exp %31 : vector<1x4x8xf32>
    %cst_24 = arith.constant dense<0.000000e+00> : vector<1x4xf32>
    %33 = vector.multi_reduction <add>, %32, %cst_24 [2] : vector<1x4x8xf32> to vector<1x4xf32>
    %34 = vector.shape_cast %33 : vector<1x4xf32> to vector<1x4x1xf32>
    %35 = vector.broadcast %34 : vector<1x4x1xf32> to vector<1x4x8xf32>
    %36 = arith.divf %32, %35 : vector<1x4x8xf32>
    %37 = vector.extract_strided_slice %36 {offsets = [0, 0, 0], sizes = [1, 1, 8], strides = [1, 1, 1]} : vector<1x4x8xf32> to vector<1x1x8xf32>
    %38 = vector.extract_strided_slice %36 {offsets = [0, 1, 0], sizes = [1, 1, 8], strides = [1, 1, 1]} : vector<1x4x8xf32> to vector<1x1x8xf32>
    %39 = vector.extract_strided_slice %36 {offsets = [0, 2, 0], sizes = [1, 1, 8], strides = [1, 1, 1]} : vector<1x4x8xf32> to vector<1x1x8xf32>
    %40 = vector.extract_strided_slice %36 {offsets = [0, 3, 0], sizes = [1, 1, 8], strides = [1, 1, 1]} : vector<1x4x8xf32> to vector<1x1x8xf32>
    %41 = tpu.concatenate %37, %38, %39, %40 in 2 : vector<1x1x8xf32>, vector<1x1x8xf32>, vector<1x1x8xf32>, vector<1x1x8xf32> -> vector<1x1x32xf32>
    %c0_25 = arith.constant 0 : index
    %c0_26 = arith.constant 0 : index
    %c0_27 = arith.constant 0 : index
    %42 = vector.load %arg10[%c0_25, %c0_26, %c0_27] : memref<1x1x32xf32, #tpu.memory_space<vmem>>, vector<1x1x32xf32>
    tpu.vector_store %arg10[%c0_25, %c0_26, %c0_27], %41 {strides = array<i32>} : memref<1x1x32xf32, #tpu.memory_space<vmem>>, vector<1x1x32xf32>,
    %43 = arith.truncf %36 : vector<1x4x8xf32> to vector<1x4x8xbf16>
    %cst_28 = arith.constant dense<0.000000e+00> : vector<1x4x64xf32>
    %44 = tpu.matmul %43, %16, %cst_28 {dimension_numbers = #tpu.dot_dimension_numbers<[2], [1], [1], [2], [0, 0, 0, 1, 1, 2], [0], [0]>} : vector<1x4x8xbf16>, vector<1x8x64xbf16>, vector<1x4x64xf32> -> vector<1x4x64xf32>
    %45 = vector.shape_cast %2 : vector<4x64xf32> to vector<1x4x64xf32>
    %46 = arith.mulf %45, %44 : vector<1x4x64xf32>
    %cst_29 = arith.constant dense<0.000000e+00> : vector<1x64xf32>
    %47 = vector.multi_reduction <add>, %46, %cst_29 [1] : vector<1x4x64xf32> to vector<1x64xf32>
    %48 = arith.truncf %47 : vector<1x64xf32> to vector<1x64xbf16>
    %c0_30 = arith.constant 0 : index
    %c0_31 = arith.constant 0 : index
    %49 = vector.load %arg5[%c0_30, %c0_31] : memref<64x32xbf16, #tpu.memory_space<vmem>>, vector<64x32xbf16>
    %cst_32 = arith.constant dense<0.000000e+00> : vector<1x32xf32>
    %50 = tpu.matmul %48, %49, %cst_32 {dimension_numbers = #tpu.dot_dimension_numbers<[1], [0], [0], [1], [0, 0, 1, 1], [], []>} : vector<1x64xbf16>, vector<64x32xbf16>, vector<1x32xf32> -> vector<1x32xf32>
    %51 = arith.addf %50, %7 : vector<1x32xf32>
    %52 = arith.addf %1, %51 : vector<1x32xf32>
    %cst_33 = arith.constant dense<0.000000e+00> : vector<1xf32>
    %53 = vector.multi_reduction <add>, %52, %cst_33 [1] : vector<1x32xf32> to vector<1xf32>
    %54 = vector.shape_cast %53 : vector<1xf32> to vector<1x1xf32>
    %cst_34 = arith.constant 3.200000e+01 : f32
    %55 = vector.broadcast %cst_34 : f32 to vector<1x1xf32>
    %56 = arith.divf %54, %55 : vector<1x1xf32>
    %57 = vector.broadcast %56 : vector<1x1xf32> to vector<1x32xf32>
    %58 = arith.subf %52, %57 : vector<1x32xf32>
    %59 = arith.mulf %58, %58 : vector<1x32xf32>
    %cst_35 = arith.constant dense<0.000000e+00> : vector<1xf32>
    %60 = vector.multi_reduction <add>, %59, %cst_35 [1] : vector<1x32xf32> to vector<1xf32>
    %61 = vector.shape_cast %60 : vector<1xf32> to vector<1x1xf32>
    %cst_36 = arith.constant 3.200000e+01 : f32
    %62 = vector.broadcast %cst_36 : f32 to vector<1x1xf32>
    %63 = arith.divf %61, %62 : vector<1x1xf32>
    %64 = vector.broadcast %56 : vector<1x1xf32> to vector<1x32xf32>
    %65 = arith.subf %52, %64 : vector<1x32xf32>
    %cst_37 = arith.constant 9.99999974E-6 : f32
    %66 = vector.broadcast %cst_37 : f32 to vector<1x1xf32>
    %67 = arith.addf %63, %66 : vector<1x1xf32>
    %68 = math.rsqrt %67 : vector<1x1xf32>
    %69 = vector.broadcast %68 : vector<1x1xf32> to vector<1x32xf32>
    %70 = arith.mulf %65, %69 : vector<1x32xf32>
    %71 = arith.mulf %70, %8 : vector<1x32xf32>
    %72 = arith.addf %71, %9 : vector<1x32xf32>
    %73 = vector.shape_cast %72 : vector<1x32xf32> to vector<1x1x32xf32>
    %c0_38 = arith.constant 0 : index
    %c0_39 = arith.constant 0 : index
    %c0_40 = arith.constant 0 : index
    %74 = vector.load %arg9[%c0_38, %c0_39, %c0_40] : memref<1x1x32xf32, #tpu.memory_space<vmem>>, vector<1x1x32xf32>
    tpu.vector_store %arg9[%c0_38, %c0_39, %c0_40], %73 {strides = array<i32>} : memref<1x1x32xf32, #tpu.memory_space<vmem>>, vector<1x1x32xf32>,
    return
  }
  func.func @transform_0(%arg0: i32) -> (i32, i32, i32) {
    %c0_i32 = arith.constant 0 : i32
    %c0_i32_0 = arith.constant 0 : i32
    %c0_i32_1 = arith.constant 0 : i32
    return %arg0, %c0_i32, %c0_i32_0 : i32, i32, i32
  }
  func.func @transform_1(%arg0: i32) -> (i32, i32, i32) {
    %c0_i32 = arith.constant 0 : i32
    %c0_i32_0 = arith.constant 0 : i32
    %c0_i32_1 = arith.constant 0 : i32
    return %arg0, %c0_i32, %c0_i32_0 : i32, i32, i32
  }
  func.func @transform_2(%arg0: i32) -> (i32, i32, i32) {
    %c0_i32 = arith.constant 0 : i32
    %c0_i32_0 = arith.constant 0 : i32
    %c0_i32_1 = arith.constant 0 : i32
    return %arg0, %c0_i32, %c0_i32_0 : i32, i32, i32
  }
  func.func @transform_3(%arg0: i32) -> (i32, i32) {
    %c0_i32 = arith.constant 0 : i32
    %c0_i32_0 = arith.constant 0 : i32
    %c0_i32_1 = arith.constant 0 : i32
    return %c0_i32, %c0_i32_0 : i32, i32
  }
  func.func @transform_4(%arg0: i32) -> (i32, i32) {
    %c0_i32 = arith.constant 0 : i32
    %c0_i32_0 = arith.constant 0 : i32
    %c0_i32_1 = arith.constant 0 : i32
    return %c0_i32, %c0_i32_0 : i32, i32
  }
  func.func @transform_5(%arg0: i32) -> (i32, i32) {
    %c0_i32 = arith.constant 0 : i32
    %c0_i32_0 = arith.constant 0 : i32
    %c0_i32_1 = arith.constant 0 : i32
    return %c0_i32, %c0_i32_0 : i32, i32
  }
  func.func @transform_6(%arg0: i32) -> (i32, i32) {
    %c0_i32 = arith.constant 0 : i32
    %c0_i32_0 = arith.constant 0 : i32
    %c0_i32_1 = arith.constant 0 : i32
    return %c0_i32, %c0_i32_0 : i32, i32
  }
  func.func @transform_7(%arg0: i32) -> (i32, i32) {
    %c0_i32 = arith.constant 0 : i32
    %c0_i32_0 = arith.constant 0 : i32
    %c0_i32_1 = arith.constant 0 : i32
    return %c0_i32, %c0_i32_0 : i32, i32
  }
  func.func @transform_8(%arg0: i32) -> (i32, i32, i32) {
    %c0_i32 = arith.constant 0 : i32
    %c0_i32_0 = arith.constant 0 : i32
    %c0_i32_1 = arith.constant 0 : i32
    return %arg0, %c0_i32, %c0_i32_0 : i32, i32, i32
  }
  func.func @transform_9(%arg0: i32) -> (i32, i32, i32) {
    %c0_i32 = arith.constant 0 : i32
    %c0_i32_0 = arith.constant 0 : i32
    %c0_i32_1 = arith.constant 0 : i32
    return %arg0, %c0_i32, %c0_i32_0 : i32, i32, i32
  }
}

</mosaic_0001>

<llo_original>
// kernel: tpu_custom_call.1
$region0: #{tpu_custom_call.1}
  #allocation0 [shape = 'u32[]', space=smem, size = 0x4, offset = 0x4, fixed_abs, tag = 'smem constant byte address 0x4 - core index']
  #allocation1 [shape = 'u32[144,128]{1,0:T(1,128)}', space=vmem, size = 0x12000, scoped, tag = 'internal scratch']
  %s0 = inlined_call_operand.vmem [shape: bf16[2,8,64], index: 0, kind: input, shape index: {}]
  %s1 = inlined_call_operand.vmem [shape: f32[2,1,32], index: 1, kind: input, shape index: {}]
  %s2 = inlined_call_operand.vmem [shape: f32[2,4,8], index: 2, kind: input, shape index: {}]
  %s3 = inlined_call_operand.vmem [shape: bf16[96,64], index: 3, kind: input, shape index: {}]
  %s4 = inlined_call_operand.vmem [shape: bf16[64,32], index: 4, kind: input, shape index: {}]
  %s5 = inlined_call_operand.vmem [shape: f32[2,64], index: 5, kind: input, shape index: {}]
  %s6 = inlined_call_operand.vmem [shape: f32[3,32], index: 6, kind: input, shape index: {}]
  %s7 = inlined_call_operand.vmem [shape: f32[4,64], index: 7, kind: input, shape index: {}]
  %s8 = inlined_call_operand.hbm [shape: f32[2,1,32], index: 8, kind: output, shape index: {0}]
  %s9 = inlined_call_operand.hbm [shape: f32[2,1,32], index: 9, kind: output, shape index: {1}]
  %10 = xla_tuple %s8, %s9
  %s11 = sld [smem:[#allocation0]]
  $region73: #{tpu_custom_call.1} parent=0
    _
  %s13 = ssub.s32 1, %s11
  %s14 = scalar_select 0, %s13, %s11
  $region1: #{tpu_custom_call.1} parent=0
    #allocation2 [shape = 'u8[1024]{0}', space=vmem, size = 0x400, scoped, tag = 'output window, operand 0']
    #allocation3 [shape = 's32[2]{0}', space=sflag, size = 0x8, scoped, tag = 'scoped memory for tpu_custom_call.1']
    #allocation4 [shape = 'u8[1024]{0}', space=vmem, size = 0x400, scoped, tag = 'output window, operand 1']
    #allocation5 [shape = 's32[2]{0}', space=sflag, size = 0x8, scoped, tag = 'scoped memory for tpu_custom_call.1']
    %15 = vsyncpa [#allocation3], 0
    %s16 = scalar_lea.sflag [#allocation3], 1
    %17 = vsyncpa %s16, 0
    %18 = vsyncpa [#allocation5], 0
    %s19 = scalar_lea.sflag [#allocation5], 1
    %20 = vsyncpa %s19, 0
    loop: start=0, step=1, limit=4
    $region2: #{tpu_custom_call.1} parent=1 // loop_pre_header
      _
    $region3: #{tpu_custom_call.1} parent=1 // loop_header
      %s22 = sphi 0, %s26
      %p23 = scmp.ge.s32.totalorder %s22, 4
      %s32 = sphi 0, %s34
      %s35 = sphi 0, %s32
      %s36 = sphi 0, %s35
      %s52 = sphi 0, %s36
      %s58 = sphi 0, %s60
      %s61 = sphi 0, %s58
      %s62 = sphi 0, %s61
      %s78 = sphi 0, %s62
      %s84 = sphi 0, %s86
      %s87 = sphi 0, %s84
      %s88 = sphi 0, %s87
      %s104 = sphi 0, %s88
      %s108 = sphi 0, %s108
      %s110 = sphi 0, %s108
      %s111 = sphi 0, %s110
      %s125 = sphi 0, %s111
      %s129 = sphi 0, %s129
      %s131 = sphi 0, %s129
      %s132 = sphi 0, %s131
      %s146 = sphi 0, %s132
      %s150 = sphi 0, %s150
      %s152 = sphi 0, %s150
      %s153 = sphi 0, %s152
      %s167 = sphi 0, %s153
      %s171 = sphi 0, %s171
      %s173 = sphi 0, %s171
      %s174 = sphi 0, %s173
      %s188 = sphi 0, %s174
      %s192 = sphi 0, %s192
      %s194 = sphi 0, %s192
      %s195 = sphi 0, %s194
      %s209 = sphi 0, %s195
      %s215 = sphi 0, %s217
      %s218 = sphi 0, %s215
      %s219 = sphi 0, %s218
      %s235 = sphi 0, %s219
      %s241 = sphi 0, %s243
      %s244 = sphi 0, %s241
      %s245 = sphi 0, %s244
      %s261 = sphi 0, %s245
    $region4: #{tpu_custom_call.1} parent=1 // loop_header_branch
      %25 = sbr.rel (%p23) target = $region8
    $region5: #{tpu_custom_call.1} parent=1 // loop_body
      %s27 = ssub.s32 %s22, 1
      %s28 = ssub.s32 %s22, 2
      %s29 = sadd.s32 %s22, 1
      %s30 = ssub.s32 %s22, %s29
      %p31 = scmp.eq.s32.totalorder %s30, 0
      %s33 = sadd.s32 %s32, 1
      %s34 = scalar_select %p31, %s32, %s33
      %p37 = pneg %p31
      %p38 = scmp.eq.s32.totalorder %s22, 1
      %p39 = por %p37, %p38
      %p40 = scmp.ne.s32.totalorder %s32, %s35
      %p41 = scmp.eq.s32.totalorder %s22, 0
      %p42 = por %p40, %p41
      %p43 = scmp.ne.s32.totalorder %s32, %s35
      %p44 = scmp.eq.s32.totalorder %s27, 1
      %p45 = por %p43, %p44
      %p46 = scmp.ne.s32.totalorder %s35, %s36
      %p47 = scmp.eq.s32.totalorder %s27, 0
      %p48 = por %p46, %p47
      %p49 = scmp.ne.s32.totalorder %s35, %s36
      %p50 = scmp.eq.s32.totalorder %s28, 1
      %p51 = por %p49, %p50
      %p53 = scmp.ne.s32.totalorder %s36, %s52
      %p54 = scmp.eq.s32.totalorder %s28, 0
      %p55 = por %p53, %p54
      %s56 = ssub.s32 %s22, %s29
      %p57 = scmp.eq.s32.totalorder %s56, 0
      %s59 = sadd.s32 %s58, 1
      %s60 = scalar_select %p57, %s58, %s59
      %p63 = pneg %p57
      %p64 = scmp.eq.s32.totalorder %s22, 1
      %p65 = por %p63, %p64
      %p66 = scmp.ne.s32.totalorder %s58, %s61
      %p67 = scmp.eq.s32.totalorder %s22, 0
      %p68 = por %p66, %p67
      %p69 = scmp.ne.s32.totalorder %s58, %s61
      %p70 = scmp.eq.s32.totalorder %s27, 1
      %p71 = por %p69, %p70
      %p72 = scmp.ne.s32.totalorder %s61, %s62
      %p73 = scmp.eq.s32.totalorder %s27, 0
      %p74 = por %p72, %p73
      %p75 = scmp.ne.s32.totalorder %s61, %s62
      %p76 = scmp.eq.s32.totalorder %s28, 1
      %p77 = por %p75, %p76
      %p79 = scmp.ne.s32.totalorder %s62, %s78
      %p80 = scmp.eq.s32.totalorder %s28, 0
      %p81 = por %p79, %p80
      %s82 = ssub.s32 %s22, %s29
      %p83 = scmp.eq.s32.totalorder %s82, 0
      %s85 = sadd.s32 %s84, 1
      %s86 = scalar_select %p83, %s84, %s85
      %p89 = pneg %p83
      %p90 = scmp.eq.s32.totalorder %s22, 1
      %p91 = por %p89, %p90
      %p92 = scmp.ne.s32.totalorder %s84, %s87
      %p93 = scmp.eq.s32.totalorder %s22, 0
      %p94 = por %p92, %p93
      %p95 = scmp.ne.s32.totalorder %s84, %s87
      %p96 = scmp.eq.s32.totalorder %s27, 1
      %p97 = por %p95, %p96
      %p98 = scmp.ne.s32.totalorder %s87, %s88
      %p99 = scmp.eq.s32.totalorder %s27, 0
      %p100 = por %p98, %p99
      %p101 = scmp.ne.s32.totalorder %s87, %s88
      %p102 = scmp.eq.s32.totalorder %s28, 1
      %p103 = por %p101, %p102
      %p105 = scmp.ne.s32.totalorder %s88, %s104
      %p106 = scmp.eq.s32.totalorder %s28, 0
      %p107 = por %p105, %p106
      %s109 = sadd.s32 %s108, 1
      %p112 = scmp.eq.s32.totalorder %s22, 1
      %p113 = scmp.ne.s32.totalorder %s108, %s110
      %p114 = scmp.eq.s32.totalorder %s22, 0
      %p115 = por %p113, %p114
      %p116 = scmp.ne.s32.totalorder %s108, %s110
      %p117 = scmp.eq.s32.totalorder %s27, 1
      %p118 = por %p116, %p117
      %p119 = scmp.ne.s32.totalorder %s110, %s111
      %p120 = scmp.eq.s32.totalorder %s27, 0
      %p121 = por %p119, %p120
      %p122 = scmp.ne.s32.totalorder %s110, %s111
      %p123 = scmp.eq.s32.totalorder %s28, 1
      %p124 = por %p122, %p123
      %p126 = scmp.ne.s32.totalorder %s111, %s125
      %p127 = scmp.eq.s32.totalorder %s28, 0
      %p128 = por %p126, %p127
      %s130 = sadd.s32 %s129, 1
      %p133 = scmp.eq.s32.totalorder %s22, 1
      %p134 = scmp.ne.s32.totalorder %s129, %s131
      %p135 = scmp.eq.s32.totalorder %s22, 0
      %p136 = por %p134, %p135
      %p137 = scmp.ne.s32.totalorder %s129, %s131
      %p138 = scmp.eq.s32.totalorder %s27, 1
      %p139 = por %p137, %p138
      %p140 = scmp.ne.s32.totalorder %s131, %s132
      %p141 = scmp.eq.s32.totalorder %s27, 0
      %p142 = por %p140, %p141
      %p143 = scmp.ne.s32.totalorder %s131, %s132
      %p144 = scmp.eq.s32.totalorder %s28, 1
      %p145 = por %p143, %p144
      %p147 = scmp.ne.s32.totalorder %s132, %s146
      %p148 = scmp.eq.s32.totalorder %s28, 0
      %p149 = por %p147, %p148
      %s151 = sadd.s32 %s150, 1
      %p154 = scmp.eq.s32.totalorder %s22, 1
      %p155 = scmp.ne.s32.totalorder %s150, %s152
      %p156 = scmp.eq.s32.totalorder %s22, 0
      %p157 = por %p155, %p156
      %p158 = scmp.ne.s32.totalorder %s150, %s152
      %p159 = scmp.eq.s32.totalorder %s27, 1
      %p160 = por %p158, %p159
      %p161 = scmp.ne.s32.totalorder %s152, %s153
      %p162 = scmp.eq.s32.totalorder %s27, 0
      %p163 = por %p161, %p162
      %p164 = scmp.ne.s32.totalorder %s152, %s153
      %p165 = scmp.eq.s32.totalorder %s28, 1
      %p166 = por %p164, %p165
      %p168 = scmp.ne.s32.totalorder %s153, %s167
      %p169 = scmp.eq.s32.totalorder %s28, 0
      %p170 = por %p168, %p169
      %s172 = sadd.s32 %s171, 1
      %p175 = scmp.eq.s32.totalorder %s22, 1
      %p176 = scmp.ne.s32.totalorder %s171, %s173
      %p177 = scmp.eq.s32.totalorder %s22, 0
      %p178 = por %p176, %p177
      %p179 = scmp.ne.s32.totalorder %s171, %s173
      %p180 = scmp.eq.s32.totalorder %s27, 1
      %p181 = por %p179, %p180
      %p182 = scmp.ne.s32.totalorder %s173, %s174
      %p183 = scmp.eq.s32.totalorder %s27, 0
      %p184 = por %p182, %p183
      %p185 = scmp.ne.s32.totalorder %s173, %s174
      %p186 = scmp.eq.s32.totalorder %s28, 1
      %p187 = por %p185, %p186
      %p189 = scmp.ne.s32.totalorder %s174, %s188
      %p190 = scmp.eq.s32.totalorder %s28, 0
      %p191 = por %p189, %p190
      %s193 = sadd.s32 %s192, 1
      %p196 = scmp.eq.s32.totalorder %s22, 1
      %p197 = scmp.ne.s32.totalorder %s192, %s194
      %p198 = scmp.eq.s32.totalorder %s22, 0
      %p199 = por %p197, %p198
      %p200 = scmp.ne.s32.totalorder %s192, %s194
      %p201 = scmp.eq.s32.totalorder %s27, 1
      %p202 = por %p200, %p201
      %p203 = scmp.ne.s32.totalorder %s194, %s195
      %p204 = scmp.eq.s32.totalorder %s27, 0
      %p205 = por %p203, %p204
      %p206 = scmp.ne.s32.totalorder %s194, %s195
      %p207 = scmp.eq.s32.totalorder %s28, 1
      %p208 = por %p206, %p207
      %p210 = scmp.ne.s32.totalorder %s195, %s209
      %p211 = scmp.eq.s32.totalorder %s28, 0
      %p212 = por %p210, %p211
      %s213 = ssub.s32 %s22, %s29
      %p214 = scmp.eq.s32.totalorder %s213, 0
      %s216 = sadd.s32 %s215, 1
      %s217 = scalar_select %p214, %s215, %s216
      %p220 = pneg %p214
      %p221 = scmp.eq.s32.totalorder %s22, 1
      %p222 = por %p220, %p221
      %p223 = scmp.ne.s32.totalorder %s215, %s218
      %p224 = scmp.eq.s32.totalorder %s22, 0
      %p225 = por %p223, %p224
      %p226 = scmp.ne.s32.totalorder %s215, %s218
      %p227 = scmp.eq.s32.totalorder %s27, 1
      %p228 = por %p226, %p227
      %p229 = scmp.ne.s32.totalorder %s218, %s219
      %p230 = scmp.eq.s32.totalorder %s27, 0
      %p231 = por %p229, %p230
      %p232 = scmp.ne.s32.totalorder %s218, %s219
      %p233 = scmp.eq.s32.totalorder %s28, 1
      %p234 = por %p232, %p233
      %p236 = scmp.ne.s32.totalorder %s219, %s235
      %p237 = scmp.eq.s32.totalorder %s28, 0
      %p238 = por %p236, %p237
      %s239 = ssub.s32 %s22, %s29
      %p240 = scmp.eq.s32.totalorder %s239, 0
      %s242 = sadd.s32 %s241, 1
      %s243 = scalar_select %p240, %s241, %s242
      %p246 = pneg %p240
      %p247 = scmp.eq.s32.totalorder %s22, 1
      %p248 = por %p246, %p247
      %p249 = scmp.ne.s32.totalorder %s241, %s244
      %p250 = scmp.eq.s32.totalorder %s22, 0
      %p251 = por %p249, %p250
      %p252 = scmp.ne.s32.totalorder %s241, %s244
      %p253 = scmp.eq.s32.totalorder %s27, 1
      %p254 = por %p252, %p253
      %p255 = scmp.ne.s32.totalorder %s244, %s245
      %p256 = scmp.eq.s32.totalorder %s27, 0
      %p257 = por %p255, %p256
      %p258 = scmp.ne.s32.totalorder %s244, %s245
      %p259 = scmp.eq.s32.totalorder %s28, 1
      %p260 = por %p258, %p259
      %p262 = scmp.ne.s32.totalorder %s245, %s261
      %p263 = scmp.eq.s32.totalorder %s28, 0
      %p264 = por %p262, %p263
      %p265 = scmp.le.s32.totalorder 1, %s22
      %p266 = scmp.lt.s32.totalorder %s22, 3
      %p267 = pnand %p265, %p266
      %p268 = pneg %p267
      // Predicated region
      $region9: #{tpu_custom_call.1} parent=5 // pred_check
        _
      $region10: #{tpu_custom_call.1} parent=5 // pred_check_branch
        %270 = sbr.rel (%p267) target = $region12
      $region11: #{tpu_custom_call.1} parent=5 // pred_region
        %s271 = ssub.s32 %s22, 1
        // Predicated region
        $region13: #{tpu_custom_call.1} parent=11 // pred_check
          %p272 = pneg %p121
        $region14: #{tpu_custom_call.1} parent=11 // pred_check_branch
          %274 = sbr.rel (%p272) target = $region16
        $region15: #{tpu_custom_call.1} parent=11 // pred_region
          _
        $region16: #{tpu_custom_call.1} parent=11 // pred_fallthru
          _
        // Predicated region
        $region17: #{tpu_custom_call.1} parent=11 // pred_check
          %p275 = pneg %p142
        $region18: #{tpu_custom_call.1} parent=11 // pred_check_branch
          %277 = sbr.rel (%p275) target = $region20
        $region19: #{tpu_custom_call.1} parent=11 // pred_region
          _
        $region20: #{tpu_custom_call.1} parent=11 // pred_fallthru
          _
        // Predicated region
        $region21: #{tpu_custom_call.1} parent=11 // pred_check
          %p278 = pneg %p163
        $region22: #{tpu_custom_call.1} parent=11 // pred_check_branch
          %280 = sbr.rel (%p278) target = $region24
        $region23: #{tpu_custom_call.1} parent=11 // pred_region
          _
        $region24: #{tpu_custom_call.1} parent=11 // pred_fallthru
          _
        // Predicated region
        $region25: #{tpu_custom_call.1} parent=11 // pred_check
          %p281 = pneg %p184
        $region26: #{tpu_custom_call.1} parent=11 // pred_check_branch
          %283 = sbr.rel (%p281) target = $region28
        $region27: #{tpu_custom_call.1} parent=11 // pred_region
          _
        $region28: #{tpu_custom_call.1} parent=11 // pred_fallthru
          _
        // Predicated region
        $region29: #{tpu_custom_call.1} parent=11 // pred_check
          %p284 = pneg %p205
        $region30: #{tpu_custom_call.1} parent=11 // pred_check_branch
          %286 = sbr.rel (%p284) target = $region32
        $region31: #{tpu_custom_call.1} parent=11 // pred_region
          _
        $region32: #{tpu_custom_call.1} parent=11 // pred_fallthru
          _
      $region12: #{tpu_custom_call.1} parent=5 // pred_fallthru
        _
      %p287 = scmp.lt.s32.totalorder %s22, 2
      // Predicated region
      $region33: #{tpu_custom_call.1} parent=5 // pred_check
        %p288 = pneg %p287
      $region34: #{tpu_custom_call.1} parent=5 // pred_check_branch
        %290 = sbr.rel (%p288) target = $region36
      $region35: #{tpu_custom_call.1} parent=5 // pred_region
        // Predicated region
        $region37: #{tpu_custom_call.1} parent=35 // pred_check
          %p291 = pneg %p42
        $region38: #{tpu_custom_call.1} parent=35 // pred_check_branch
          %293 = sbr.rel (%p291) target = $region40
        $region39: #{tpu_custom_call.1} parent=35 // pred_region
          %p294 = scmp.lt.s32.totalorder %s22, 1
          %s295 = scalar_select %p294, %s22, 1
          %s296 = smul.addr %s295, 4
          %s297 = scalar_lea.vmem %s0, %s296
        $region40: #{tpu_custom_call.1} parent=35 // pred_fallthru
          _
        // Predicated region
        $region41: #{tpu_custom_call.1} parent=35 // pred_check
          %p298 = pneg %p68
        $region42: #{tpu_custom_call.1} parent=35 // pred_check_branch
          %300 = sbr.rel (%p298) target = $region44
        $region43: #{tpu_custom_call.1} parent=35 // pred_region
          %p301 = scmp.lt.s32.totalorder %s22, 1
          %s302 = scalar_select %p301, %s22, 1
          %s303 = scalar_lea.vmem %s1, %s302
        $region44: #{tpu_custom_call.1} parent=35 // pred_fallthru
          _
        // Predicated region
        $region45: #{tpu_custom_call.1} parent=35 // pred_check
          %p304 = pneg %p94
        $region46: #{tpu_custom_call.1} parent=35 // pred_check_branch
          %306 = sbr.rel (%p304) target = $region48
        $region47: #{tpu_custom_call.1} parent=35 // pred_region
          %p307 = scmp.lt.s32.totalorder %s22, 1
          %s308 = scalar_select %p307, %s22, 1
          %s309 = smul.addr %s308, 4
          %s310 = scalar_lea.vmem %s2, %s309
        $region48: #{tpu_custom_call.1} parent=35 // pred_fallthru
          _
      $region36: #{tpu_custom_call.1} parent=5 // pred_fallthru
        _
      %p311 = scmp.le.s32.totalorder 1, %s22
      %p312 = scmp.lt.s32.totalorder %s22, 3
      %p313 = pnand %p311, %p312
      %p314 = pneg %p313
      // Predicated region
      $region49: #{tpu_custom_call.1} parent=5 // pred_check
        _
      $region50: #{tpu_custom_call.1} parent=5 // pred_check_branch
        %316 = sbr.rel (%p313) target = $region52
      $region51: #{tpu_custom_call.1} parent=5 // pred_region
        %s317 = ssub.s32 %s22, 1
        %p318 = scmp.lt.s32.totalorder %s27, 1
        %s319 = scalar_select %p318, %s27, 1
        %s320 = smul.addr %s319, 4
        %s321 = scalar_lea.vmem %s0, %s320
        %p322 = pneg %p48
        %p323 = pneg %p45
        %p324 = scmp.lt.s32.totalorder %s27, 1
        %s325 = scalar_select %p324, %s27, 1
        %s326 = scalar_lea.vmem %s1, %s325
        %p327 = pneg %p74
        %p328 = pneg %p71
        %p329 = scmp.lt.s32.totalorder %s27, 1
        %s330 = scalar_select %p329, %s27, 1
        %s331 = smul.addr %s330, 4
        %s332 = scalar_lea.vmem %s2, %s331
        %p333 = pneg %p100
        %p334 = pneg %p97
        %p335 = pneg %p121
        %p336 = pneg %p118
        %p337 = pneg %p142
        %p338 = pneg %p139
        %p339 = pneg %p163
        %p340 = pneg %p160
        %p341 = pneg %p184
        %p342 = pneg %p181
        %p343 = pneg %p205
        %p344 = pneg %p202
        %p345 = pneg %p231
        %p346 = pneg %p228
        %s347 = sand.u32 %s218, 1
        %s348 = scalar_lea.sflag [#allocation3], %s347
        %s349 = sand.u32 %s218, 1
        %s350 = scalar_lea.vmem [#allocation2], %s349
        %p351 = pneg %p257
        %p352 = pneg %p254
        %s353 = sand.u32 %s244, 1
        %s354 = scalar_lea.sflag [#allocation5], %s353
        %s355 = sand.u32 %s244, 1
        %s356 = scalar_lea.vmem [#allocation4], %s355
        %p357 = scmp.lt.s32.totalorder %s27, 1
        %s358 = scalar_select %p357, %s27, 1
        %s359 = smul.addr %s358, 4
        %s360 = scalar_lea.vmem %s0, %s359
        %p361 = scmp.lt.s32.totalorder %s27, 1
        %s362 = scalar_select %p361, %s27, 1
        %s363 = scalar_lea.vmem %s1, %s362
        %p364 = scmp.lt.s32.totalorder %s27, 1
        %s365 = scalar_select %p364, %s27, 1
        %s366 = smul.addr %s365, 4
        %s367 = scalar_lea.vmem %s2, %s366
        %v369 = vld [vmem:[%s363] sm:$0x1]
        %v370 = vld [vmem:[%s7] sm:$0xf]
        %v371 = vld [vmem:[%s3] sm:$0xf]
        %v372 = vld [vmem:[%s3 + $0x4] sm:$0xf]
        %v373 = vld [vmem:[%s3 + $0x8] sm:$0xf]
        %v374 = vld [vmem:[%s3 + $0xc] sm:$0xf]
        %v375 = vld [vmem:[%s3 + $0x10] sm:$0xf]
        %v376 = vld [vmem:[%s3 + $0x14] sm:$0xf]
        %v377 = vld [vmem:[%s3 + $0x18] sm:$0xf]
        %v378 = vld [vmem:[%s3 + $0x1c] sm:$0xf]
        %v379 = vld [vmem:[%s3 + $0x20] sm:$0xf]
        %v380 = vld [vmem:[%s3 + $0x24] sm:$0xf]
        %v381 = vld [vmem:[%s3 + $0x28] sm:$0xf]
        %v382 = vld [vmem:[%s3 + $0x2c] sm:$0xf]
        %v383 = vld [vmem:[%s5] sm:$0x1]
        %v384 = vld [vmem:[%s5 + $0x1] sm:$0x1]
        %v385 = vld [vmem:[%s6] sm:$0x1]
        %v386 = vld [vmem:[%s6 + $0x1] sm:$0x1]
        %v387 = vld [vmem:[%s6 + $0x2] sm:$0x1]
        %v388 = vld [vmem:[%s360] sm:$0xf]
        %v389 = vlaneseq
        %v390 = vshrl.u32 %v389, 7
        %v391 = vsub.s32 0, %v390
        %v392 = vrot.slane %v383, %v391
        %v401 = vunpack.c.l.b16 %v371
        %v402 = vunpack.c.l.b16 %v372
        %v403 = vunpack.c.l.b16 %v373
        %v404 = vunpack.c.l.b16 %v374
        %v405 = vunpack.c.l.b16 %v375
        %v406 = vunpack.c.l.b16 %v376
        %v407 = vunpack.c.l.b16 %v377
        %v408 = vunpack.c.l.b16 %v378
        %v409 = vpack.c.b16 %v402, %v401
        %v410 = vpack.c.b16 %v404, %v403
        %v411 = vpack.c.b16 %v406, %v405
        %v412 = vpack.c.b16 %v408, %v407
        %vm417 = vcmask 523264
        %v419 = vsel %vm417, %v388, 0
        %421 = vmatprep.subr.bf16.mxu0 0
        %422 = vmatpush1.bf16.msra.mxu0 %v409
        %423 = vmatprep.subr.bf16.mxu0 0
        %424 = vmatpush1.bf16.msra.mxu0 %v410
        %425 = vmatprep.subr.bf16.mxu0 0
        %426 = vmatpush1.bf16.msra.mxu0 %v411
        %427 = vmatprep.subr.bf16.mxu0 0
        %428 = vmatpush1.bf16.msra.mxu0 %v412
        %429 = vmatprep.subr.bf16.mxu0 0
        %430 = vmatpush1.bf16.msra.mxu0 0
        %431 = vmatprep.subr.bf16.mxu0 0
        %432 = vmatpush1.bf16.msra.mxu0 0
        %433 = vmatprep.subr.bf16.mxu0 0
        %434 = vmatpush1.bf16.msra.mxu0 0
        %435 = vmatprep.subr.bf16.mxu0 0
        %436 = vmatpush1.bf16.msra.mxu0 0
        %437 = vmatprep.subr.bf16.mxu0 0
        %438 = vmatpush1.bf16.msra.mxu0 0
        %439 = vmatprep.subr.bf16.mxu0 0
        %440 = vmatpush1.bf16.msra.mxu0 0
        %441 = vmatprep.subr.bf16.mxu0 0
        %442 = vmatpush1.bf16.msra.mxu0 0
        %443 = vmatprep.subr.bf16.mxu0 0
        %444 = vmatpush1.bf16.msra.mxu0 0
        %445 = vmatprep.subr.bf16.mxu0 0
        %446 = vmatpush1.bf16.msra.mxu0 0
        %447 = vmatprep.subr.bf16.mxu0 0
        %448 = vmatpush1.bf16.msra.mxu0 0
        %449 = vmatprep.subr.bf16.mxu0 0
        %450 = vmatpush1.bf16.msra.mxu0 0
        %451 = vmatprep.subr.bf16.mxu0 0
        %452 = vmatpush1.bf16.msra.mxu0 0
        %453 = vmatprep.mubr.bf16.mxu0 0
        %454 = vmatmul.mubr.bf16.gmra.mrb[0].mxu0 %v419
        %v455 = vpop.f32.mrb[0].mxu0
        %v456 = vadd.f32 %v392, %v455
        %v457 = vpop.f32.mrb[0].mxu0
        %v458 = vpop.f32.mrb[0].mxu0
        %v459 = vpop.f32.mrb[0].mxu0
        %460 = vdwg.mxu0
        %v461 = vpack.c.bf16 %v456, %v456
        %v462 = vpack.c.bf16 %v369, %v369
        %v467 = vunpack.c.l.b16 %v379
        %v468 = vunpack.c.l.b16 %v380
        %v469 = vunpack.c.l.b16 %v381
        %v470 = vunpack.c.l.b16 %v382
        %v471 = vpack.c.b16 %v468, %v467
        %v472 = vpack.c.b16 %v470, %v469
        %vm475 = vcmask 261120
        %v477 = vsel %vm475, %v462, 0
        %479 = vmatprep.subr.bf16.mxu0 0
        %480 = vmatpush1.bf16.msra.mxu0 %v471
        %481 = vmatprep.subr.bf16.mxu0 0
        %482 = vmatpush1.bf16.msra.mxu0 %v472
        %483 = vmatprep.subr.bf16.mxu0 0
        %484 = vmatpush1.bf16.msra.mxu0 0
        %485 = vmatprep.subr.bf16.mxu0 0
        %486 = vmatpush1.bf16.msra.mxu0 0
        %487 = vmatprep.subr.bf16.mxu0 0
        %488 = vmatpush1.bf16.msra.mxu0 0
        %489 = vmatprep.subr.bf16.mxu0 0
        %490 = vmatpush1.bf16.msra.mxu0 0
        %491 = vmatprep.subr.bf16.mxu0 0
        %492 = vmatpush1.bf16.msra.mxu0 0
        %493 = vmatprep.subr.bf16.mxu0 0
        %494 = vmatpush1.bf16.msra.mxu0 0
        %495 = vmatprep.subr.bf16.mxu0 0
        %496 = vmatpush1.bf16.msra.mxu0 0
        %497 = vmatprep.subr.bf16.mxu0 0
        %498 = vmatpush1.bf16.msra.mxu0 0
        %499 = vmatprep.subr.bf16.mxu0 0
        %500 = vmatpush1.bf16.msra.mxu0 0
        %501 = vmatprep.subr.bf16.mxu0 0
        %502 = vmatpush1.bf16.msra.mxu0 0
        %503 = vmatprep.subr.bf16.mxu0 0
        %504 = vmatpush1.bf16.msra.mxu0 0
        %505 = vmatprep.subr.bf16.mxu0 0
        %506 = vmatpush1.bf16.msra.mxu0 0
        %507 = vmatprep.subr.bf16.mxu0 0
        %508 = vmatpush1.bf16.msra.mxu0 0
        %509 = vmatprep.subr.bf16.mxu0 0
        %510 = vmatpush1.bf16.msra.mxu0 0
        %511 = vmatprep.mubr.bf16.mxu0 0
        %512 = vmatmul.mubr.bf16.gmra.mrb[0].mxu0 %v477
        %v513 = vpop.f32.mrb[0].mxu0
        %v514 = vadd.f32 %v384, %v513
        %v515 = vpop.f32.mrb[0].mxu0
        %v516 = vpop.f32.mrb[0].mxu0
        %v517 = vpop.f32.mrb[0].mxu0
        %518 = vdwg.mxu0
        %v519 = vlaneseq
        %v520 = vshrl.u32 %v519, 7
        %v521 = vsub.s32 0, %v520
        %v522 = vrot.slane %v514, %v521
        %v523 = vmul.f32 %v370, %v522
        %v524 = vpack.c.bf16 %v523, %v523
        %v525 = vld [vmem:[%s367] sm:$0xf]
        %v527 = vsel %vm417, %v524, 0
        %v530 = vsel %vm417, %v461, 0
        %532 = vmatprep.subr.bf16.mxu0 0
        %533 = vmatpush1.bf16.xpose.msra.mxu0 %v530
        %534 = vmatprep.subr.bf16.mxu0 0
        %535 = vmatpush1.bf16.xpose.msra.mxu0 0
        %536 = vmatprep.subr.bf16.mxu0 0
        %537 = vmatpush1.bf16.xpose.msra.mxu0 0
        %538 = vmatprep.subr.bf16.mxu0 0
        %539 = vmatpush1.bf16.xpose.msra.mxu0 0
        %540 = vmatprep.subr.bf16.mxu0 0
        %541 = vmatpush1.bf16.xpose.msra.mxu0 0
        %542 = vmatprep.subr.bf16.mxu0 0
        %543 = vmatpush1.bf16.xpose.msra.mxu0 0
        %544 = vmatprep.subr.bf16.mxu0 0
        %545 = vmatpush1.bf16.xpose.msra.mxu0 0
        %546 = vmatprep.subr.bf16.mxu0 0
        %547 = vmatpush1.bf16.xpose.msra.mxu0 0
        %548 = vmatprep.subr.bf16.mxu0 0
        %549 = vmatpush1.bf16.xpose.msra.mxu0 0
        %550 = vmatprep.subr.bf16.mxu0 0
        %551 = vmatpush1.bf16.xpose.msra.mxu0 0
        %552 = vmatprep.subr.bf16.mxu0 0
        %553 = vmatpush1.bf16.xpose.msra.mxu0 0
        %554 = vmatprep.subr.bf16.mxu0 0
        %555 = vmatpush1.bf16.xpose.msra.mxu0 0
        %556 = vmatprep.subr.bf16.mxu0 0
        %557 = vmatpush1.bf16.xpose.msra.mxu0 0
        %558 = vmatprep.subr.bf16.mxu0 0
        %559 = vmatpush1.bf16.xpose.msra.mxu0 0
        %560 = vmatprep.subr.bf16.mxu0 0
        %561 = vmatpush1.bf16.xpose.msra.mxu0 0
        %562 = vmatprep.subr.bf16.mxu0 0
        %563 = vmatpush1.bf16.xpose.msra.mxu0 0
        %564 = vmatprep.mubr.bf16.mxu0 0
        %565 = vmatmul.mubr.bf16.gmra.mrb[0].mxu0 %v527
        %v566 = vpop.f32.mrb[0].mxu0
        %v567 = vadd.f32 %v525, %v566
        %v568 = vpop.f32.mrb[0].mxu0
        %v569 = vpop.f32.mrb[0].mxu0
        %v570 = vpop.f32.mrb[0].mxu0
        %571 = vdwg.mxu0
        %vm572 = vcmask 60416
        %v573 = vsel %vm572, %v567, -inf
        %574 = vmax.xlane.f32.xlu0 %v573
        %v575 = vpop.xlane.xlu0 %574
        %v576 = vsub.f32 %v567, %v575
        %v577 = vmul.f32 %v576, 1.442695
        %v578 = vpow.pop %v577
        %v579 = vsel %vm572, %v578, 0.0
        %580 = vadd.xlane.f32.xlu0 %v579
        %v581 = vpop.xlane.xlu0 %580
        %v582 = vrcp.pop %v581
        %v583 = vmul.f32 %v578, %v582
        %v585 = vrot.slane %v583, 1
        %586 = vrot.lane.b32.xlu0 %v585, 8
        %v587 = vpop.permute.xlu0 %586
        %v589 = vrot.slane %v583, 2
        %590 = vrot.lane.b32.xlu0 %v589, 16
        %v591 = vpop.permute.xlu0 %590
        %v593 = vrot.slane %v583, 3
        %594 = vrot.lane.b32.xlu0 %v593, 24
        %v595 = vpop.permute.xlu0 %594
        %vm597 = vcmask 64512
        %v598 = vsel %vm597, %v583, %v587
        %vm599 = vcmask 130048
        %v600 = vsel %vm599, %v598, %v591
        %vm601 = vcmask 195584
        %v602 = vsel %vm601, %v600, %v595
        %vm603 = vcmask 253952
        %604 = vst.msk [vmem:[%s356] sm:$0x1] %vm603, %v602
        %v605 = vpack.c.bf16 %v583, %v583
        %v607 = vsel %vm597, %v605, 0
        %vm609 = vcmask 1043456
        %v610 = vsel %vm609, %v461, 0
        %612 = vmatprep.subr.bf16.mxu0 0
        %613 = vmatpush1.bf16.msra.mxu0 %v610
        %614 = vmatprep.subr.bf16.mxu0 0
        %615 = vmatpush1.bf16.msra.mxu0 0
        %616 = vmatprep.subr.bf16.mxu0 0
        %617 = vmatpush1.bf16.msra.mxu0 0
        %618 = vmatprep.subr.bf16.mxu0 0
        %619 = vmatpush1.bf16.msra.mxu0 0
        %620 = vmatprep.subr.bf16.mxu0 0
        %621 = vmatpush1.bf16.msra.mxu0 0
        %622 = vmatprep.subr.bf16.mxu0 0
        %623 = vmatpush1.bf16.msra.mxu0 0
        %624 = vmatprep.subr.bf16.mxu0 0
        %625 = vmatpush1.bf16.msra.mxu0 0
        %626 = vmatprep.subr.bf16.mxu0 0
        %627 = vmatpush1.bf16.msra.mxu0 0
        %628 = vmatprep.subr.bf16.mxu0 0
        %629 = vmatpush1.bf16.msra.mxu0 0
        %630 = vmatprep.subr.bf16.mxu0 0
        %631 = vmatpush1.bf16.msra.mxu0 0
        %632 = vmatprep.subr.bf16.mxu0 0
        %633 = vmatpush1.bf16.msra.mxu0 0
        %634 = vmatprep.subr.bf16.mxu0 0
        %635 = vmatpush1.bf16.msra.mxu0 0
        %636 = vmatprep.subr.bf16.mxu0 0
        %637 = vmatpush1.bf16.msra.mxu0 0
        %638 = vmatprep.subr.bf16.mxu0 0
        %639 = vmatpush1.bf16.msra.mxu0 0
        %640 = vmatprep.subr.bf16.mxu0 0
        %641 = vmatpush1.bf16.msra.mxu0 0
        %642 = vmatprep.subr.bf16.mxu0 0
        %643 = vmatpush1.bf16.msra.mxu0 0
        %644 = vmatprep.mubr.bf16.mxu0 0
        %645 = vmatmul.mubr.bf16.gmra.mrb[0].mxu0 %v607
        %v646 = vpop.f32.mrb[0].mxu0
        %v647 = vadd.f32 0.0, %v646
        %v648 = vpop.f32.mrb[0].mxu0
        %v649 = vpop.f32.mrb[0].mxu0
        %v650 = vpop.f32.mrb[0].mxu0
        %651 = vdwg.mxu0
        %v652 = vmul.f32 %v370, %v647
        %vm653 = vcmask 519168
        %v654 = vsel %vm653, %v652, 0.0
        %v655 = vrot.slane %v654, 4
        %v656 = vadd.f32 %v654, %v655
        %v657 = vrot.slane %v656, 2
        %v658 = vadd.f32 %v656, %v657
        %v659 = vrot.slane %v658, 1
        %v660 = vadd.f32 %v658, %v659
        %v661 = vpack.c.bf16 %v660, %v660
        %v662 = vld [vmem:[%s4] sm:$0xf]
        %v663 = vld [vmem:[%s4 + $0x4] sm:$0xf]
        %v664 = vld [vmem:[%s4 + $0x8] sm:$0xf]
        %v665 = vld [vmem:[%s4 + $0xc] sm:$0xf]
        %v666 = vld [vmem:[%s4 + $0x10] sm:$0xf]
        %v667 = vld [vmem:[%s4 + $0x14] sm:$0xf]
        %v668 = vld [vmem:[%s4 + $0x18] sm:$0xf]
        %v669 = vld [vmem:[%s4 + $0x1c] sm:$0xf]
        %v678 = vunpack.c.l.b16 %v662
        %v679 = vunpack.c.l.b16 %v663
        %v680 = vunpack.c.l.b16 %v664
        %v681 = vunpack.c.l.b16 %v665
        %v682 = vunpack.c.l.b16 %v666
        %v683 = vunpack.c.l.b16 %v667
        %v684 = vunpack.c.l.b16 %v668
        %v685 = vunpack.c.l.b16 %v669
        %v686 = vpack.c.b16 %v679, %v678
        %v687 = vpack.c.b16 %v681, %v680
        %v688 = vpack.c.b16 %v683, %v682
        %v689 = vpack.c.b16 %v685, %v684
        %v695 = vsel %vm417, %v661, 0
        %697 = vmatprep.subr.bf16.mxu0 0
        %698 = vmatpush1.bf16.msra.mxu0 %v686
        %699 = vmatprep.subr.bf16.mxu0 0
        %700 = vmatpush1.bf16.msra.mxu0 %v687
        %701 = vmatprep.subr.bf16.mxu0 0
        %702 = vmatpush1.bf16.msra.mxu0 %v688
        %703 = vmatprep.subr.bf16.mxu0 0
        %704 = vmatpush1.bf16.msra.mxu0 %v689
        %705 = vmatprep.subr.bf16.mxu0 0
        %706 = vmatpush1.bf16.msra.mxu0 0
        %707 = vmatprep.subr.bf16.mxu0 0
        %708 = vmatpush1.bf16.msra.mxu0 0
        %709 = vmatprep.subr.bf16.mxu0 0
        %710 = vmatpush1.bf16.msra.mxu0 0
        %711 = vmatprep.subr.bf16.mxu0 0
        %712 = vmatpush1.bf16.msra.mxu0 0
        %713 = vmatprep.subr.bf16.mxu0 0
        %714 = vmatpush1.bf16.msra.mxu0 0
        %715 = vmatprep.subr.bf16.mxu0 0
        %716 = vmatpush1.bf16.msra.mxu0 0
        %717 = vmatprep.subr.bf16.mxu0 0
        %718 = vmatpush1.bf16.msra.mxu0 0
        %719 = vmatprep.subr.bf16.mxu0 0
        %720 = vmatpush1.bf16.msra.mxu0 0
        %721 = vmatprep.subr.bf16.mxu0 0
        %722 = vmatpush1.bf16.msra.mxu0 0
        %723 = vmatprep.subr.bf16.mxu0 0
        %724 = vmatpush1.bf16.msra.mxu0 0
        %725 = vmatprep.subr.bf16.mxu0 0
        %726 = vmatpush1.bf16.msra.mxu0 0
        %727 = vmatprep.subr.bf16.mxu0 0
        %728 = vmatpush1.bf16.msra.mxu0 0
        %729 = vmatprep.mubr.bf16.mxu0 0
        %730 = vmatmul.mubr.bf16.gmra.mrb[0].mxu0 %v695
        %v731 = vpop.f32.mrb[0].mxu0
        %v732 = vadd.f32 %v385, %v731
        %v733 = vpop.f32.mrb[0].mxu0
        %v734 = vpop.f32.mrb[0].mxu0
        %v735 = vpop.f32.mrb[0].mxu0
        %736 = vdwg.mxu0
        %v737 = vadd.f32 %v369, %v732
        %v738 = vsel %vm603, %v737, 0.0
        %739 = vadd.xlane.f32.xlu0 %v738
        %v740 = vpop.xlane.xlu0 %739
        %v741 = vrcp.pop 32.0
        %v742 = vmul.f32 %v740, %v741
        %v743 = vsub.f32 %v737, %v742
        %v744 = vmul.f32 %v743, %v743
        %v745 = vsel %vm603, %v744, 0.0
        %746 = vadd.xlane.f32.xlu0 %v745
        %v747 = vpop.xlane.xlu0 %746
        %v748 = vmul.f32 %v747, %v741
        %v749 = vadd.f32 %v748, 1e-05
        %v750 = vrsqrt.pop %v749
        %v751 = vmul.f32 %v743, %v750
        %v752 = vmul.f32 %v751, %v386
        %v753 = vadd.f32 %v752, %v387
        %754 = vst.msk [vmem:[%s350] sm:$0x1] %vm603, %v753
        %s755 = sand.u32 %s218, 1
        %s756 = scalar_lea.sflag [#allocation3], %s755
        %s757 = sand.u32 %s218, 1
        %s758 = scalar_lea.vmem [#allocation2], %s757
        %s759 = sand.u32 %s244, 1
        %s760 = scalar_lea.sflag [#allocation5], %s759
        %s761 = sand.u32 %s244, 1
        %s762 = scalar_lea.vmem [#allocation4], %s761
        // Predicated region
        $region53: #{tpu_custom_call.1} parent=51 // pred_check
          %p763 = pneg %p228
        $region54: #{tpu_custom_call.1} parent=51 // pred_check_branch
          %765 = sbr.rel (%p763) target = $region56
        $region55: #{tpu_custom_call.1} parent=51 // pred_region
          %s767 = ssub.s32 16, 16
          %768 = vsyncadd %s756, %s767
          %s769 = smul.addr %s27, 16
          %s770 = scalar_lea.hbm %s8, %s769
          %s772 = sshll.u32 %s758, 4
          %s773 = int_to_ptr.vmem [resolvable:$true] %s772
          %775 = dma.vmem_to_hbm [thread:$0]  %s773, 16, %s770, %s756
        $region56: #{tpu_custom_call.1} parent=51 // pred_fallthru
          _
        // Predicated region
        $region57: #{tpu_custom_call.1} parent=51 // pred_check
          %p776 = pneg %p254
        $region58: #{tpu_custom_call.1} parent=51 // pred_check_branch
          %778 = sbr.rel (%p776) target = $region60
        $region59: #{tpu_custom_call.1} parent=51 // pred_region
          %s780 = ssub.s32 16, 16
          %781 = vsyncadd %s760, %s780
          %s782 = smul.addr %s27, 16
          %s783 = scalar_lea.hbm %s9, %s782
          %s785 = sshll.u32 %s762, 4
          %s786 = int_to_ptr.vmem [resolvable:$true] %s785
          %788 = dma.vmem_to_hbm [thread:$0]  %s786, 16, %s783, %s760
        $region60: #{tpu_custom_call.1} parent=51 // pred_fallthru
          _
      $region52: #{tpu_custom_call.1} parent=5 // pred_fallthru
        _
      %p789 = scmp.le.s32.totalorder 2, %s22
      // Predicated region
      $region61: #{tpu_custom_call.1} parent=5 // pred_check
        %p790 = pneg %p789
      $region62: #{tpu_custom_call.1} parent=5 // pred_check_branch
        %792 = sbr.rel (%p790) target = $region64
      $region63: #{tpu_custom_call.1} parent=5 // pred_region
        %s793 = ssub.s32 %s22, 2
        // Predicated region
        $region65: #{tpu_custom_call.1} parent=63 // pred_check
          %p794 = pneg %p234
        $region66: #{tpu_custom_call.1} parent=63 // pred_check_branch
          %796 = sbr.rel (%p794) target = $region68
        $region67: #{tpu_custom_call.1} parent=63 // pred_region
          %s797 = sand.u32 %s219, 1
          %s798 = scalar_lea.sflag [#allocation3], %s797
          %s799 = sand.u32 %s219, 1
          %s800 = scalar_lea.vmem [#allocation2], %s799
          %801 = dma.done %s798, 16
        $region68: #{tpu_custom_call.1} parent=63 // pred_fallthru
          _
        // Predicated region
        $region69: #{tpu_custom_call.1} parent=63 // pred_check
          %p802 = pneg %p260
        $region70: #{tpu_custom_call.1} parent=63 // pred_check_branch
          %804 = sbr.rel (%p802) target = $region72
        $region71: #{tpu_custom_call.1} parent=63 // pred_region
          %s805 = sand.u32 %s245, 1
          %s806 = scalar_lea.sflag [#allocation5], %s805
          %s807 = sand.u32 %s245, 1
          %s808 = scalar_lea.vmem [#allocation4], %s807
          %809 = dma.done %s806, 16
        $region72: #{tpu_custom_call.1} parent=63 // pred_fallthru
          _
      $region64: #{tpu_custom_call.1} parent=5 // pred_fallthru
        _
    $region6: #{tpu_custom_call.1} parent=1 // loop_footer
      %s26 = sadd.s32 1, %s22
    $region7: #{tpu_custom_call.1} parent=1 // loop_footer_branch
      %21 = sbr.rel target = $region3
    $region8: #{tpu_custom_call.1} parent=1 // loop_exit
      _
    %810 = vsyncpa [#allocation3], 1
    %s811 = scalar_lea.sflag [#allocation3], 1
    %812 = vsyncpa %s811, 1
    %813 = vsyncpa [#allocation5], 1
    %s814 = scalar_lea.sflag [#allocation5], 1
    %815 = vsyncpa %s814, 1

</llo_original>
